<compile_context>
chip_gen: v5e
topology: v5e:2x2
jax: 0.10.0
libtpu: 0.0.40
codegen_flags: <defaults>
</compile_context>

<pallas_src>
import functools
import math

import jax
import jax.numpy as jnp
from jax import lax
from jax.experimental import pallas as pl
from jax.experimental.pallas import tpu as pltpu

_MASK_VALUE = -1e30  # large negative key-mask value (avoids -inf - -inf NaNs)


# ---------------------------------------------------------------------------
# Pre-pass kernel: Q / K / V projection (hoisted out of the flash KV loop).
# ---------------------------------------------------------------------------
def _qkv_proj_kernel(x_ref, wq_ref, wkv_ref, q_ref, k_ref, v_ref):
    """x tile (1, T, Cp) -> q, k, v tiles (1, T, Cp).

    wq has the softmax scale pre-folded; wkv is the concatenated [Wk | Wv]
    so K and V come from a single MXU matmul.
    """
    cp = q_ref.shape[-1]
    x = x_ref[0]
    q = jnp.dot(x, wq_ref[...], preferred_element_type=jnp.float32)
    kv = jnp.dot(x, wkv_ref[...], preferred_element_type=jnp.float32)
    q_ref[0] = q.astype(q_ref.dtype)
    k_ref[0] = kv[:, :cp].astype(k_ref.dtype)
    v_ref[0] = kv[:, cp:].astype(v_ref.dtype)


# ---------------------------------------------------------------------------
# Flash-attention kernel (online softmax) for one (batch, query-tile) pair.
# ---------------------------------------------------------------------------
def _flash_attention_kernel(q_ref, k_ref, v_ref, wproj_ref, bproj_ref, o_ref,
                            m_scr, l_scr, acc_scr,
                            *, num_heads, head_dim, n_tokens, needs_mask):
    """q_ref:     (1, TQ, Cp)   projected (pre-scaled) queries
       k_ref:     (1, TK, Cp)   projected keys
       v_ref:     (1, TK, Cp)   projected values
       wproj_ref: (Cp, Cp)      output projection (in, out)
       bproj_ref: (1, Cp)       output projection bias (f32)
       o_ref:     (1, TQ, Cp)
       m_scr/l_scr/acc_scr: (TQ, Cp) f32  running max / denom / accumulator
       (per-head scalar state is broadcast across that head's Cp columns so
        all scratch stores are lane-dense)."""
    nh, dp = num_heads, head_dim
    tk = k_ref.shape[1]
    ki = pl.program_id(2)
    nk = pl.num_programs(2)
    mxu_dtype = q_ref.dtype

    # ---- init state on the first KV tile of this query tile.
    @pl.when(ki == 0)
    def _init():
        m_scr[...] = jnp.full(m_scr.shape, _MASK_VALUE, jnp.float32)
        l_scr[...] = jnp.zeros(l_scr.shape, jnp.float32)
        acc_scr[...] = jnp.zeros(acc_scr.shape, jnp.float32)

    q_all = q_ref[0]                                   # (TQ, Cp)
    k_all = k_ref[0]                                   # (TK, Cp)
    v_all = v_ref[0]                                   # (TK, Cp)

    if needs_mask:
        key_idx = ki * tk + lax.broadcasted_iota(jnp.int32, (1, tk), 1)
        kmask = key_idx < n_tokens                      # (1, TK)

    # ---- per-head online softmax.  Static python loop => static channel
    #      slices, 2-D MXU matmuls with TK / dp in the lane dim.
    # TODO(synk): if bundle dumps show ld/st spills at 256-wide tiles, bound
    # the per-head live ranges (lax.fori_loop + pl.ds slicing).
    for h in range(nh):
        sl = slice(h * dp, (h + 1) * dp)
        q_h = q_all[:, sl]                              # (TQ, dp)
        k_h = k_all[:, sl]                              # (TK, dp)
        v_h = v_all[:, sl]                              # (TK, dp)

        # scores: contract head_dim without materializing k^T
        s = lax.dot_general(q_h, k_h, (((1,), (1,)), ((), ())),
                            preferred_element_type=jnp.float32)  # (TQ, TK)
        if needs_mask:
            s = jnp.where(kmask, s, _MASK_VALUE)

        m_prev = m_scr[:, sl]                           # (TQ, dp), cols equal
        m_new = jnp.maximum(m_prev, jnp.max(s, axis=-1, keepdims=True))
        alpha = jnp.exp(m_prev - m_new)                 # (TQ, dp)
        p = jnp.exp(s - m_new[:, :1])                   # (TQ, TK) f32

        l_scr[:, sl] = alpha * l_scr[:, sl] + jnp.sum(p, axis=-1, keepdims=True)
        acc_scr[:, sl] = alpha * acc_scr[:, sl] + jnp.dot(
            p.astype(mxu_dtype), v_h, preferred_element_type=jnp.float32)
        m_scr[:, sl] = m_new

    # ---- finalize: deferred normalization (one elementwise multiply) +
    #      ONE fused output-projection matmul at full contraction depth.
    @pl.when(ki == nk - 1)
    def _finalize():
        o = acc_scr[...] * pl.reciprocal(l_scr[...], approx=True)
        y = jnp.dot(o.astype(mxu_dtype), wproj_ref[...],
                    preferred_element_type=jnp.float32)
        y = y + bproj_ref[...]
        o_ref[0] = y.astype(o_ref.dtype)


def _vmem_limit(bytes_needed):
    """2x headroom over the double-buffered footprint, capped for v7x (64 MiB/TC)."""
    return int(min(max(2 * bytes_needed, 16 * 1024 * 1024), 64 * 1024 * 1024))


def attention_forward(x, wq, wkv, wproj, bproj, *, num_heads,
                      mxu_dtype=jnp.bfloat16, interpret=False):
    """Forward pass of the ESRA `Attention` module (sr_ratio=1, linear=False).

    x: (B, N, C); wq: (C, C); wkv: (C, 2C); wproj: (C, C); bproj: (C,)
    Weights are in (in_features, out_features) layout (transpose of the
    PyTorch Linear weight) so the kernels compute plain `x @ W`.
    """
    B, N, C = x.shape
    assert C % num_heads == 0
    d = C // num_heads
    scale = d ** (-0.5)
    out_dtype = x.dtype

    # ---- per-head channel padding: smallest d_pad >= d with nh*d_pad % 128 == 0
    g = math.gcd(num_heads, 128)
    step = 128 // g
    d_pad = ((d + step - 1) // step) * step
    c_pad = num_heads * d_pad                      # always a multiple of 128

    # Fold the softmax scale into Wq once, on the static weight.
    wq = wq * scale

    def pad_qkv_weight(w):                         # (C, C) -> (c_pad, c_pad)
        w = w.reshape(C, num_heads, d)
        w = jnp.pad(w, ((0, c_pad - C), (0, 0), (0, d_pad - d)))
        return w.reshape(c_pad, c_pad)

    wq_p = pad_qkv_weight(wq).astype(mxu_dtype)
    wk_p = pad_qkv_weight(wkv[:, :C])
    wv_p = pad_qkv_weight(wkv[:, C:])
    wkv_p = jnp.concatenate([wk_p, wv_p], axis=1).astype(mxu_dtype)  # (c_pad, 2c_pad)

    wproj_p = wproj.reshape(num_heads, d, C)       # per-head input pad + output pad
    wproj_p = jnp.pad(wproj_p, ((0, 0), (0, d_pad - d), (0, c_pad - C)))
    wproj_p = wproj_p.reshape(c_pad, c_pad).astype(mxu_dtype)
    bproj_p = jnp.pad(bproj, (0, c_pad - C)).reshape(1, c_pad).astype(jnp.float32)

    # ---- token padding: N -> multiple of 128; 256-wide tiles when possible.
    n_pad = ((N + 127) // 128) * 128
    t = 256 if n_pad % 256 == 0 else 128
    # TODO(synk): on v5e 128-token tiles already saturate the 4x128^2 MXU;
    # 256 matches v6e/v7x.  No runtime chip dispatch here.
    needs_mask = n_pad != N

    x_p = jnp.pad(x, ((0, 0), (0, n_pad - N), (0, c_pad - C))).astype(mxu_dtype)

    itemsize = jnp.dtype(mxu_dtype).itemsize
    n_tiles = n_pad // t

    # -------------------- pre-pass: Q / K / V projection --------------------
    proj_blocks = (t * c_pad * itemsize            # x tile
                   + 3 * c_pad * c_pad * itemsize  # wq + wkv
                   + 3 * t * c_pad * itemsize)     # q, k, v tiles
    q, k, v = pl.pallas_call(
        _qkv_proj_kernel,
        out_shape=(
            jax.ShapeDtypeStruct((B, n_pad, c_pad), mxu_dtype),
            jax.ShapeDtypeStruct((B, n_pad, c_pad), mxu_dtype),
            jax.ShapeDtypeStruct((B, n_pad, c_pad), mxu_dtype),
        ),
        grid_spec=pltpu.PrefetchScalarGridSpec(
            num_scalar_prefetch=0,
            grid=(B, n_tiles),
            in_specs=[
                pl.BlockSpec((1, t, c_pad), lambda b, i: (b, i, 0)),
                pl.BlockSpec((c_pad, c_pad), lambda b, i: (0, 0)),
                pl.BlockSpec((c_pad, 2 * c_pad), lambda b, i: (0, 0)),
            ],
            out_specs=[
                pl.BlockSpec((1, t, c_pad), lambda b, i: (b, i, 0)),
                pl.BlockSpec((1, t, c_pad), lambda b, i: (b, i, 0)),
                pl.BlockSpec((1, t, c_pad), lambda b, i: (b, i, 0)),
            ],
        ),
        compiler_params=pltpu.CompilerParams(
            dimension_semantics=("parallel", "parallel"),
            vmem_limit_bytes=_vmem_limit(2 * proj_blocks),
        ),
        interpret=interpret,
    )(x_p, wq_p, wkv_p)

    # -------------------- flash attention + fused output proj ---------------
    kernel = functools.partial(
        _flash_attention_kernel,
        num_heads=num_heads, head_dim=d_pad, n_tokens=N, needs_mask=needs_mask)

    # NOTE: Wq/Wkv are no longer resident in this kernel; only Wproj + bias
    # (constant blocks) remain and their footprint is small.
    flash_blocks = (3 * t * c_pad * itemsize                  # q, k, v tiles
                    + c_pad * c_pad * itemsize                # wproj
                    + c_pad * 4                               # bproj
                    + t * c_pad * jnp.dtype(out_dtype).itemsize)  # out tile
    scratch_bytes = 3 * t * c_pad * 4                         # m, l, acc (f32)

    y = pl.pallas_call(
        kernel,
        out_shape=jax.ShapeDtypeStruct((B, n_pad, c_pad), out_dtype),
        grid_spec=pltpu.PrefetchScalarGridSpec(
            num_scalar_prefetch=0,
            grid=(B, n_tiles, n_tiles),
            in_specs=[
                pl.BlockSpec((1, t, c_pad), lambda b, qi, ki: (b, qi, 0)),  # Q
                pl.BlockSpec((1, t, c_pad), lambda b, qi, ki: (b, ki, 0)),  # K
                pl.BlockSpec((1, t, c_pad), lambda b, qi, ki: (b, ki, 0)),  # V
                pl.BlockSpec((c_pad, c_pad), lambda b, qi, ki: (0, 0)),     # Wproj
                pl.BlockSpec((1, c_pad), lambda b, qi, ki: (0, 0)),         # bproj
            ],
            out_specs=pl.BlockSpec((1, t, c_pad), lambda b, qi, ki: (b, qi, 0)),
            scratch_shapes=[
                pltpu.VMEM((t, c_pad), jnp.float32),   # running max
                pltpu.VMEM((t, c_pad), jnp.float32),   # running denominator
                pltpu.VMEM((t, c_pad), jnp.float32),   # unnormalized output acc
            ],
        ),
        compiler_params=pltpu.CompilerParams(
            dimension_semantics=("parallel", "parallel", "arbitrary"),
            vmem_limit_bytes=_vmem_limit(2 * flash_blocks + scratch_bytes),
        ),
        interpret=interpret,
    )(q, k, v, wproj_p, bproj_p)

    return y[:, :N, :C]


def attention_reference(x, wq, wkv, wproj, bproj, *, num_heads):
    """Plain-JAX f32 reference mirroring the PyTorch forward (sr_ratio=1, linear=False)."""
    B, N, C = x.shape
    d = C // num_heads
    scale = d ** (-0.5)
    q = (x @ wq).reshape(B, N, num_heads, d).transpose(0, 2, 1, 3)
    kv = (x @ wkv).reshape(B, N, 2, num_heads, d).transpose(2, 0, 3, 1, 4)
    k, v = kv[0], kv[1]
    attn = jnp.einsum('bhnd,bhmd->bhnm', q, k) * scale
    attn = jax.nn.softmax(attn, axis=-1)
    out = jnp.einsum('bhnm,bhmd->bhnd', attn, v)
    out = out.transpose(0, 2, 1, 3).reshape(B, N, C)
    return out @ wproj + bproj


if __name__ == "__main__":
    # Small, module-consistent shapes: dim=32, num_heads=8 (head_dim=4),
    # H=W=8 -> N=64 tokens, batch B=2.
    B, H, W = 2, 8, 8
    C = 32
    num_heads = 8
    N = H * W

    key = jax.random.PRNGKey(0)
    kx, kq, kkv, kp = jax.random.split(key, 4)

    x = jax.random.normal(kx, (B, N, C), dtype=jnp.float32)

    # Deterministic synthetic weights (trunc_normal(std=0.02) approximated by
    # normal * 0.02; biases zero per _init_weights), stored as (in, out).
    wq = 0.02 * jax.random.normal(kq, (C, C), dtype=jnp.float32)
    wkv = 0.02 * jax.random.normal(kkv, (C, 2 * C), dtype=jnp.float32)
    wproj = 0.02 * jax.random.normal(kp, (C, C), dtype=jnp.float32)
    bproj = jnp.zeros((C,), dtype=jnp.float32)

    # TODO(synk): sr_ratio>1 (strided Conv2d spatial reduction + LayerNorm) and
    # linear=True (AdaptiveAvgPool2d + GELU) branches are not exercised by the
    # default config and are not implemented; attn_drop/proj_drop are identity
    # at p=0.0 / eval.

    y = attention_forward(x, wq, wkv, wproj, bproj, num_heads=num_heads)
    y = jax.block_until_ready(y)

    y_ref = attention_reference(x, wq, wkv, wproj, bproj, num_heads=num_heads)
    err = float(jnp.max(jnp.abs(y - y_ref)))
    assert y.shape == (B, N, C)
    # bf16 MXU operands + approx reciprocal vs an f32 reference -> loose tolerance.
    assert err < 2e-2, f"max abs err {err}"

    print("KERNEL_OK")
</pallas_src>

<mosaic_0001>
module attributes {stable_mosaic.version = 11 : i64} {
  func.func @_qkv_proj_kernel(%arg0: i32, %arg1: i32, %arg2: memref<1x128x128xbf16, #tpu.memory_space<vmem>>, %arg3: memref<128x128xbf16, #tpu.memory_space<vmem>>, %arg4: memref<128x256xbf16, #tpu.memory_space<vmem>>, %arg5: memref<1x128x128xbf16, #tpu.memory_space<vmem>>, %arg6: memref<1x128x128xbf16, #tpu.memory_space<vmem>>, %arg7: memref<1x128x128xbf16, #tpu.memory_space<vmem>>) attributes {dimension_semantics = [#tpu.dimension_semantics<parallel>, #tpu.dimension_semantics<parallel>], iteration_bounds = array<i64: 2, 1>, scalar_prefetch = 0 : i64, scratch_operands = 0 : i64, tpu.core_type = #tpu.core_type<tc>, window_params = [{transform_indices = @transform_0, window_bounds = array<i64: 1, 128, 128>}, {pipeline_mode = #tpu.pipeline_mode<synchronous>, transform_indices = @transform_1, window_bounds = array<i64: 128, 128>}, {pipeline_mode = #tpu.pipeline_mode<synchronous>, transform_indices = @transform_2, window_bounds = array<i64: 128, 256>}, {transform_indices = @transform_3, window_bounds = array<i64: 1, 128, 128>}, {transform_indices = @transform_4, window_bounds = array<i64: 1, 128, 128>}, {transform_indices = @transform_5, window_bounds = array<i64: 1, 128, 128>}]} {
    %c0 = arith.constant 0 : index
    %c0_0 = arith.constant 0 : index
    %c0_1 = arith.constant 0 : index
    %0 = vector.load %arg2[%c0, %c0_0, %c0_1] : memref<1x128x128xbf16, #tpu.memory_space<vmem>>, vector<1x128x128xbf16>
    %1 = vector.shape_cast %0 : vector<1x128x128xbf16> to vector<128x128xbf16>
    %c0_2 = arith.constant 0 : index
    %c0_3 = arith.constant 0 : index
    %2 = vector.load %arg3[%c0_2, %c0_3] : memref<128x128xbf16, #tpu.memory_space<vmem>>, vector<128x128xbf16>
    %cst = arith.constant dense<0.000000e+00> : vector<128x128xf32>
    %3 = tpu.matmul %1, %2, %cst {dimension_numbers = #tpu.dot_dimension_numbers<[1], [0], [0], [1], [0, 0, 1, 1], [], []>} : vector<128x128xbf16>, vector<128x128xbf16>, vector<128x128xf32> -> vector<128x128xf32>
    %c0_4 = arith.constant 0 : index
    %c0_5 = arith.constant 0 : index
    %4 = vector.load %arg4[%c0_4, %c0_5] : memref<128x256xbf16, #tpu.memory_space<vmem>>, vector<128x256xbf16>
    %cst_6 = arith.constant dense<0.000000e+00> : vector<128x256xf32>
    %5 = tpu.matmul %1, %4, %cst_6 {dimension_numbers = #tpu.dot_dimension_numbers<[1], [0], [0], [1], [0, 0, 1, 1], [], []>} : vector<128x128xbf16>, vector<128x256xbf16>, vector<128x256xf32> -> vector<128x256xf32>
    %6 = arith.truncf %3 : vector<128x128xf32> to vector<128x128xbf16>
    %c0_7 = arith.constant 0 : index
    %c0_8 = arith.constant 0 : index
    %c0_9 = arith.constant 0 : index
    %7 = vector.load %arg5[%c0_7, %c0_8, %c0_9] : memref<1x128x128xbf16, #tpu.memory_space<vmem>>, vector<1x128x128xbf16>
    %8 = vector.shape_cast %7 : vector<1x128x128xbf16> to vector<128x128xbf16>
    %9 = vector.shape_cast %6 : vector<128x128xbf16> to vector<1x128x128xbf16>
    tpu.vector_store %arg5[%c0_7, %c0_8, %c0_9], %9 {strides = array<i32>} : memref<1x128x128xbf16, #tpu.memory_space<vmem>>, vector<1x128x128xbf16>,
    %10 = vector.extract_strided_slice %5 {offsets = [0, 0], sizes = [128, 128], strides = [1, 1]} : vector<128x256xf32> to vector<128x128xf32>
    %11 = arith.truncf %10 : vector<128x128xf32> to vector<128x128xbf16>
    %c0_10 = arith.constant 0 : index
    %c0_11 = arith.constant 0 : index
    %c0_12 = arith.constant 0 : index
    %12 = vector.load %arg6[%c0_10, %c0_11, %c0_12] : memref<1x128x128xbf16, #tpu.memory_space<vmem>>, vector<1x128x128xbf16>
    %13 = vector.shape_cast %12 : vector<1x128x128xbf16> to vector<128x128xbf16>
    %14 = vector.shape_cast %11 : vector<128x128xbf16> to vector<1x128x128xbf16>
    tpu.vector_store %arg6[%c0_10, %c0_11, %c0_12], %14 {strides = array<i32>} : memref<1x128x128xbf16, #tpu.memory_space<vmem>>, vector<1x128x128xbf16>,
    %15 = vector.extract_strided_slice %5 {offsets = [0, 128], sizes = [128, 128], strides = [1, 1]} : vector<128x256xf32> to vector<128x128xf32>
    %16 = arith.truncf %15 : vector<128x128xf32> to vector<128x128xbf16>
    %c0_13 = arith.constant 0 : index
    %c0_14 = arith.constant 0 : index
    %c0_15 = arith.constant 0 : index
    %17 = vector.load %arg7[%c0_13, %c0_14, %c0_15] : memref<1x128x128xbf16, #tpu.memory_space<vmem>>, vector<1x128x128xbf16>
    %18 = vector.shape_cast %17 : vector<1x128x128xbf16> to vector<128x128xbf16>
    %19 = vector.shape_cast %16 : vector<128x128xbf16> to vector<1x128x128xbf16>
    tpu.vector_store %arg7[%c0_13, %c0_14, %c0_15], %19 {strides = array<i32>} : memref<1x128x128xbf16, #tpu.memory_space<vmem>>, vector<1x128x128xbf16>,
    return
  }
  func.func @transform_0(%arg0: i32, %arg1: i32) -> (i32, i32, i32) {
    %c0_i32 = arith.constant 0 : i32
    %c0_i32_0 = arith.constant 0 : i32
    return %arg0, %arg1, %c0_i32 : i32, i32, i32
  }
  func.func @transform_1(%arg0: i32, %arg1: i32) -> (i32, i32) {
    %c0_i32 = arith.constant 0 : i32
    %c0_i32_0 = arith.constant 0 : i32
    %c0_i32_1 = arith.constant 0 : i32
    return %c0_i32, %c0_i32_0 : i32, i32
  }
  func.func @transform_2(%arg0: i32, %arg1: i32) -> (i32, i32) {
    %c0_i32 = arith.constant 0 : i32
    %c0_i32_0 = arith.constant 0 : i32
    %c0_i32_1 = arith.constant 0 : i32
    return %c0_i32, %c0_i32_0 : i32, i32
  }
  func.func @transform_3(%arg0: i32, %arg1: i32) -> (i32, i32, i32) {
    %c0_i32 = arith.constant 0 : i32
    %c0_i32_0 = arith.constant 0 : i32
    return %arg0, %arg1, %c0_i32 : i32, i32, i32
  }
  func.func @transform_4(%arg0: i32, %arg1: i32) -> (i32, i32, i32) {
    %c0_i32 = arith.constant 0 : i32
    %c0_i32_0 = arith.constant 0 : i32
    return %arg0, %arg1, %c0_i32 : i32, i32, i32
  }
  func.func @transform_5(%arg0: i32, %arg1: i32) -> (i32, i32, i32) {
    %c0_i32 = arith.constant 0 : i32
    %c0_i32_0 = arith.constant 0 : i32
    return %arg0, %arg1, %c0_i32 : i32, i32, i32
  }
}

</mosaic_0001>

<llo_original>
// kernel: tpu_custom_call.1
$region0: #{tpu_custom_call.1}
  #allocation0 [shape = 'u32[]', space=smem, size = 0x4, offset = 0x4, fixed_abs, tag = 'smem constant byte address 0x4 - core index']
  #allocation1 [shape = 'u32[72,128]{1,0:T(1,128)}', space=vmem, size = 0x9000, scoped, tag = 'internal scratch']
  %s0 = inlined_call_operand.hbm [shape: bf16[2,128,128], index: 0, kind: input, shape index: {}]
  %s1 = inlined_call_operand.hbm [shape: bf16[128,128], index: 1, kind: input, shape index: {}]
  %s2 = inlined_call_operand.hbm [shape: bf16[128,256], index: 2, kind: input, shape index: {}]
  %s3 = inlined_call_operand.hbm [shape: bf16[2,128,128], index: 3, kind: output, shape index: {0}]
  %s4 = inlined_call_operand.hbm [shape: bf16[2,128,128], index: 4, kind: output, shape index: {1}]
  %s5 = inlined_call_operand.hbm [shape: bf16[2,128,128], index: 5, kind: output, shape index: {2}]
  %6 = xla_tuple %s3, %s4, %s5
  %s7 = sld [smem:[#allocation0]]
  $region73: #{tpu_custom_call.1} parent=0
    _
  %s9 = ssub.s32 1, %s7
  %s10 = scalar_select 0, %s9, %s7
  $region1: #{tpu_custom_call.1} parent=0
    #allocation2 [shape = 'u8[65536]{0}', space=vmem, size = 0x10000, scoped, tag = 'input window, operand 0']
    #allocation3 [shape = 's32[2]{0}', space=sflag, size = 0x8, scoped, tag = 'scoped memory for tpu_custom_call.1']
    #allocation4 [shape = 's32[2]{0}', space=sflag, size = 0x8, scoped, tag = 'scoped memory for tpu_custom_call.1']
    #allocation5 [shape = 'u8[32768]{0}', space=vmem, size = 0x8000, scoped, tag = 'input window, operand 1, single buffered']
    #allocation6 [shape = 's32[1]{0}', space=sflag, size = 0x4, scoped, tag = 'scoped memory for tpu_custom_call.1']
    #allocation7 [shape = 'u8[65536]{0}', space=vmem, size = 0x10000, scoped, tag = 'input window, operand 2, single buffered']
    #allocation8 [shape = 'u8[65536]{0}', space=vmem, size = 0x10000, scoped, tag = 'output window, operand 0']
    #allocation9 [shape = 'u8[65536]{0}', space=vmem, size = 0x10000, scoped, tag = 'output window, operand 1']
    #allocation10 [shape = 's32[2]{0}', space=sflag, size = 0x8, scoped, tag = 'scoped memory for tpu_custom_call.1']
    #allocation11 [shape = 'u8[65536]{0}', space=vmem, size = 0x10000, scoped, tag = 'output window, operand 2']
    %11 = vsyncpa [#allocation3], 0
    %s12 = scalar_lea.sflag [#allocation3], 1
    %13 = vsyncpa %s12, 0
    %14 = vsyncpa [#allocation6], 0
    %15 = vsyncpa [#allocation4], 0
    %s16 = scalar_lea.sflag [#allocation4], 1
    %17 = vsyncpa %s16, 0
    %18 = vsyncpa [#allocation10], 0
    %s19 = scalar_lea.sflag [#allocation10], 1
    %20 = vsyncpa %s19, 0
    loop: start=0, step=1, limit=4
    $region2: #{tpu_custom_call.1} parent=1 // loop_pre_header
      _
    $region3: #{tpu_custom_call.1} parent=1 // loop_header
      %s22 = sphi 0, %s26
      %p23 = scmp.ge.s32.totalorder %s22, 4
      %s29 = sphi 0, %s41
      %s30 = sphi 0, %s37
      %s31 = sphi 0, %s29
      %s32 = sphi 0, %s30
      %s33 = sphi 0, %s31
      %s34 = sphi 0, %s32
      %s46 = sphi 0, %s48
      %s49 = sphi 0, %s46
      %s50 = sphi 0, %s49
      %s66 = sphi 0, %s50
      %s70 = sphi 0, %s70
      %s72 = sphi 0, %s70
      %s73 = sphi 0, %s72
      %s87 = sphi 0, %s73
      %s91 = sphi 0, %s91
      %s93 = sphi 0, %s91
      %s94 = sphi 0, %s93
      %s108 = sphi 0, %s94
      %s116 = sphi 0, %s118
      %s119 = sphi 0, %s116
      %s120 = sphi 0, %s119
      %s136 = sphi 0, %s120
      %s144 = sphi 0, %s146
      %s147 = sphi 0, %s144
      %s148 = sphi 0, %s147
      %s164 = sphi 0, %s148
      %s172 = sphi 0, %s174
      %s175 = sphi 0, %s172
      %s176 = sphi 0, %s175
      %s192 = sphi 0, %s176
    $region4: #{tpu_custom_call.1} parent=1 // loop_header_branch
      %25 = sbr.rel (%p23) target = $region8
    $region5: #{tpu_custom_call.1} parent=1 // loop_body
      %s27 = ssub.s32 %s22, 1
      %s28 = ssub.s32 %s22, 2
      %s35 = sadd.s32 1, %s30
      %p36 = scmp.ge.s32.totalorder %s35, 1
      %s37 = scalar_select %p36, 0, %s35
      %s38 = sadd.s32 1, %s29
      %s39 = scalar_select %p36, %s38, %s29
      %p40 = scmp.ge.s32.totalorder %s39, 2
      %s41 = scalar_select %p40, 0, %s39
      %s42 = ssub.s32 %s29, %s41
      %s43 = ssub.s32 %s30, %s37
      %s44 = sor.u32 %s42, %s43
      %p45 = scmp.eq.s32.totalorder %s44, 0
      %s47 = sadd.s32 %s46, 1
      %s48 = scalar_select %p45, %s46, %s47
      %p51 = pneg %p45
      %p52 = scmp.eq.s32.totalorder %s22, 1
      %p53 = por %p51, %p52
      %p54 = scmp.ne.s32.totalorder %s46, %s49
      %p55 = scmp.eq.s32.totalorder %s22, 0
      %p56 = por %p54, %p55
      %p57 = scmp.ne.s32.totalorder %s46, %s49
      %p58 = scmp.eq.s32.totalorder %s27, 1
      %p59 = por %p57, %p58
      %p60 = scmp.ne.s32.totalorder %s49, %s50
      %p61 = scmp.eq.s32.totalorder %s27, 0
      %p62 = por %p60, %p61
      %p63 = scmp.ne.s32.totalorder %s49, %s50
      %p64 = scmp.eq.s32.totalorder %s28, 1
      %p65 = por %p63, %p64
      %p67 = scmp.ne.s32.totalorder %s50, %s66
      %p68 = scmp.eq.s32.totalorder %s28, 0
      %p69 = por %p67, %p68
      %s71 = sadd.s32 %s70, 1
      %p74 = scmp.eq.s32.totalorder %s22, 1
      %p75 = scmp.ne.s32.totalorder %s70, %s72
      %p76 = scmp.eq.s32.totalorder %s22, 0
      %p77 = por %p75, %p76
      %p78 = scmp.ne.s32.totalorder %s70, %s72
      %p79 = scmp.eq.s32.totalorder %s27, 1
      %p80 = por %p78, %p79
      %p81 = scmp.ne.s32.totalorder %s72, %s73
      %p82 = scmp.eq.s32.totalorder %s27, 0
      %p83 = por %p81, %p82
      %p84 = scmp.ne.s32.totalorder %s72, %s73
      %p85 = scmp.eq.s32.totalorder %s28, 1
      %p86 = por %p84, %p85
      %p88 = scmp.ne.s32.totalorder %s73, %s87
      %p89 = scmp.eq.s32.totalorder %s28, 0
      %p90 = por %p88, %p89
      %s92 = sadd.s32 %s91, 1
      %p95 = scmp.eq.s32.totalorder %s22, 1
      %p96 = scmp.ne.s32.totalorder %s91, %s93
      %p97 = scmp.eq.s32.totalorder %s22, 0
      %p98 = por %p96, %p97
      %p99 = scmp.ne.s32.totalorder %s91, %s93
      %p100 = scmp.eq.s32.totalorder %s27, 1
      %p101 = por %p99, %p100
      %p102 = scmp.ne.s32.totalorder %s93, %s94
      %p103 = scmp.eq.s32.totalorder %s27, 0
      %p104 = por %p102, %p103
      %p105 = scmp.ne.s32.totalorder %s93, %s94
      %p106 = scmp.eq.s32.totalorder %s28, 1
      %p107 = por %p105, %p106
      %p109 = scmp.ne.s32.totalorder %s94, %s108
      %p110 = scmp.eq.s32.totalorder %s28, 0
      %p111 = por %p109, %p110
      %s112 = ssub.s32 %s29, %s41
      %s113 = ssub.s32 %s30, %s37
      %s114 = sor.u32 %s112, %s113
      %p115 = scmp.eq.s32.totalorder %s114, 0
      %s117 = sadd.s32 %s116, 1
      %s118 = scalar_select %p115, %s116, %s117
      %p121 = pneg %p115
      %p122 = scmp.eq.s32.totalorder %s22, 1
      %p123 = por %p121, %p122
      %p124 = scmp.ne.s32.totalorder %s116, %s119
      %p125 = scmp.eq.s32.totalorder %s22, 0
      %p126 = por %p124, %p125
      %p127 = scmp.ne.s32.totalorder %s116, %s119
      %p128 = scmp.eq.s32.totalorder %s27, 1
      %p129 = por %p127, %p128
      %p130 = scmp.ne.s32.totalorder %s119, %s120
      %p131 = scmp.eq.s32.totalorder %s27, 0
      %p132 = por %p130, %p131
      %p133 = scmp.ne.s32.totalorder %s119, %s120
      %p134 = scmp.eq.s32.totalorder %s28, 1
      %p135 = por %p133, %p134
      %p137 = scmp.ne.s32.totalorder %s120, %s136
      %p138 = scmp.eq.s32.totalorder %s28, 0
      %p139 = por %p137, %p138
      %s140 = ssub.s32 %s29, %s41
      %s141 = ssub.s32 %s30, %s37
      %s142 = sor.u32 %s140, %s141
      %p143 = scmp.eq.s32.totalorder %s142, 0
      %s145 = sadd.s32 %s144, 1
      %s146 = scalar_select %p143, %s144, %s145
      %p149 = pneg %p143
      %p150 = scmp.eq.s32.totalorder %s22, 1
      %p151 = por %p149, %p150
      %p152 = scmp.ne.s32.totalorder %s144, %s147
      %p153 = scmp.eq.s32.totalorder %s22, 0
      %p154 = por %p152, %p153
      %p155 = scmp.ne.s32.totalorder %s144, %s147
      %p156 = scmp.eq.s32.totalorder %s27, 1
      %p157 = por %p155, %p156
      %p158 = scmp.ne.s32.totalorder %s147, %s148
      %p159 = scmp.eq.s32.totalorder %s27, 0
      %p160 = por %p158, %p159
      %p161 = scmp.ne.s32.totalorder %s147, %s148
      %p162 = scmp.eq.s32.totalorder %s28, 1
      %p163 = por %p161, %p162
      %p165 = scmp.ne.s32.totalorder %s148, %s164
      %p166 = scmp.eq.s32.totalorder %s28, 0
      %p167 = por %p165, %p166
      %s168 = ssub.s32 %s29, %s41
      %s169 = ssub.s32 %s30, %s37
      %s170 = sor.u32 %s168, %s169
      %p171 = scmp.eq.s32.totalorder %s170, 0
      %s173 = sadd.s32 %s172, 1
      %s174 = scalar_select %p171, %s172, %s173
      %p177 = pneg %p171
      %p178 = scmp.eq.s32.totalorder %s22, 1
      %p179 = por %p177, %p178
      %p180 = scmp.ne.s32.totalorder %s172, %s175
      %p181 = scmp.eq.s32.totalorder %s22, 0
      %p182 = por %p180, %p181
      %p183 = scmp.ne.s32.totalorder %s172, %s175
      %p184 = scmp.eq.s32.totalorder %s27, 1
      %p185 = por %p183, %p184
      %p186 = scmp.ne.s32.totalorder %s175, %s176
      %p187 = scmp.eq.s32.totalorder %s27, 0
      %p188 = por %p186, %p187
      %p189 = scmp.ne.s32.totalorder %s175, %s176
      %p190 = scmp.eq.s32.totalorder %s28, 1
      %p191 = por %p189, %p190
      %p193 = scmp.ne.s32.totalorder %s176, %s192
      %p194 = scmp.eq.s32.totalorder %s28, 0
      %p195 = por %p193, %p194
      %p196 = scmp.le.s32.totalorder 1, %s22
      %p197 = scmp.lt.s32.totalorder %s22, 3
      %p198 = pnand %p196, %p197
      %p199 = pneg %p198
      // Predicated region
      $region9: #{tpu_custom_call.1} parent=5 // pred_check
        _
      $region10: #{tpu_custom_call.1} parent=5 // pred_check_branch
        %201 = sbr.rel (%p198) target = $region12
      $region11: #{tpu_custom_call.1} parent=5 // pred_region
        %s202 = ssub.s32 %s22, 1
        // Predicated region
        $region13: #{tpu_custom_call.1} parent=11 // pred_check
          %p203 = pneg %p83
        $region14: #{tpu_custom_call.1} parent=11 // pred_check_branch
          %205 = sbr.rel (%p203) target = $region16
        $region15: #{tpu_custom_call.1} parent=11 // pred_region
          %207 = vsyncadd [#allocation6], 0
          %s208 = sshll.u32 %s1, 4
          %s209 = int_to_ptr.hbm [resolvable:$true] %s208
          %s210 = sshll.u32 [#allocation5], 4
          %s211 = int_to_ptr.vmem [resolvable:$true] %s210
          %216 = dma.hbm_to_vmem [thread:$0]  %s209, 1024, %s211, [#allocation6], 64, 64, 4
        $region16: #{tpu_custom_call.1} parent=11 // pred_fallthru
          _
        // Predicated region
        $region17: #{tpu_custom_call.1} parent=11 // pred_check
          %p217 = pneg %p104
        $region18: #{tpu_custom_call.1} parent=11 // pred_check_branch
          %219 = sbr.rel (%p217) target = $region20
        $region19: #{tpu_custom_call.1} parent=11 // pred_region
          %221 = vsyncadd [#allocation6], 0
          %s222 = sshll.u32 %s2, 4
          %s223 = int_to_ptr.hbm [resolvable:$true] %s222
          %s224 = sshll.u32 [#allocation7], 4
          %s225 = int_to_ptr.vmem [resolvable:$true] %s224
          %230 = dma.hbm_to_vmem [thread:$0]  %s223, 2048, %s225, [#allocation6], 128, 128, 8
        $region20: #{tpu_custom_call.1} parent=11 // pred_fallthru
          _
      $region12: #{tpu_custom_call.1} parent=5 // pred_fallthru
        _
      %p231 = scmp.lt.s32.totalorder %s22, 2
      // Predicated region
      $region21: #{tpu_custom_call.1} parent=5 // pred_check
        %p232 = pneg %p231
      $region22: #{tpu_custom_call.1} parent=5 // pred_check_branch
        %234 = sbr.rel (%p232) target = $region24
      $region23: #{tpu_custom_call.1} parent=5 // pred_region
        // Predicated region
        $region25: #{tpu_custom_call.1} parent=23 // pred_check
          %p235 = pneg %p56
        $region26: #{tpu_custom_call.1} parent=23 // pred_check_branch
          %237 = sbr.rel (%p235) target = $region28
        $region27: #{tpu_custom_call.1} parent=23 // pred_region
          %s238 = sand.u32 %s46, 1
          %s239 = scalar_lea.sflag [#allocation3], %s238
          %s240 = sand.u32 %s46, 1
          %s241 = smul.addr %s240, 64
          %s242 = scalar_lea.vmem [#allocation2], %s241
          %s243 = smul.u32 16, %s30
          %245 = vsyncadd %s239, 0
          %s246 = smul.addr %s29, 16
          %s247 = sadd.s32 %s243, %s246
          %s248 = smul.addr %s247, 4
          %s249 = scalar_lea.hbm %s0, %s248
          %s250 = sshll.u32 %s249, 4
          %s251 = int_to_ptr.hbm [resolvable:$true] %s250
          %s252 = sshll.u32 %s242, 4
          %s253 = int_to_ptr.vmem [resolvable:$true] %s252
          %258 = dma.hbm_to_vmem [thread:$0]  %s251, 1024, %s253, %s239, 64, 64, 4
        $region28: #{tpu_custom_call.1} parent=23 // pred_fallthru
          _
      $region24: #{tpu_custom_call.1} parent=5 // pred_fallthru
        _
      %p259 = scmp.le.s32.totalorder 1, %s22
      %p260 = scmp.lt.s32.totalorder %s22, 3
      %p261 = pnand %p259, %p260
      %p262 = pneg %p261
      // Predicated region
      $region29: #{tpu_custom_call.1} parent=5 // pred_check
        _
      $region30: #{tpu_custom_call.1} parent=5 // pred_check_branch
        %264 = sbr.rel (%p261) target = $region32
      $region31: #{tpu_custom_call.1} parent=5 // pred_region
        %s265 = ssub.s32 %s22, 1
        %s266 = sand.u32 %s49, 1
        %s267 = scalar_lea.sflag [#allocation3], %s266
        %s268 = sand.u32 %s49, 1
        %s269 = smul.addr %s268, 64
        %s270 = scalar_lea.vmem [#allocation2], %s269
        // Predicated region
        $region33: #{tpu_custom_call.1} parent=31 // pred_check
          %p271 = pneg %p62
        $region34: #{tpu_custom_call.1} parent=31 // pred_check_branch
          %273 = sbr.rel (%p271) target = $region36
        $region35: #{tpu_custom_call.1} parent=31 // pred_region
          %275 = dma.done %s267, 1024
        $region36: #{tpu_custom_call.1} parent=31 // pred_fallthru
          _
        // Predicated region
        $region37: #{tpu_custom_call.1} parent=31 // pred_check
          %p276 = pneg %p83
        $region38: #{tpu_custom_call.1} parent=31 // pred_check_branch
          %278 = sbr.rel (%p276) target = $region40
        $region39: #{tpu_custom_call.1} parent=31 // pred_region
          %280 = dma.done [#allocation6], 1024
        $region40: #{tpu_custom_call.1} parent=31 // pred_fallthru
          _
        // Predicated region
        $region41: #{tpu_custom_call.1} parent=31 // pred_check
          %p281 = pneg %p104
        $region42: #{tpu_custom_call.1} parent=31 // pred_check_branch
          %283 = sbr.rel (%p281) target = $region44
        $region43: #{tpu_custom_call.1} parent=31 // pred_region
          %285 = dma.done [#allocation6], 2048
        $region44: #{tpu_custom_call.1} parent=31 // pred_fallthru
          _
        %s286 = sand.u32 %s49, 1
        %s287 = scalar_lea.sflag [#allocation3], %s286
        %s288 = sand.u32 %s49, 1
        %s289 = smul.addr %s288, 64
        %s290 = scalar_lea.vmem [#allocation2], %s289
        %p291 = pneg %p62
        %p292 = pneg %p59
        %p293 = pneg %p83
        %p294 = pneg %p80
        %p295 = pneg %p104
        %p296 = pneg %p101
        %p297 = pneg %p132
        %p298 = pneg %p129
        %s299 = sand.u32 %s119, 1
        %s300 = scalar_lea.sflag [#allocation4], %s299
        %s301 = sand.u32 %s119, 1
        %s302 = smul.addr %s301, 64
        %s303 = scalar_lea.vmem [#allocation8], %s302
        %p304 = pneg %p160
        %p305 = pneg %p157
        %s306 = sand.u32 %s27, 1
        %s307 = scalar_lea.sflag [#allocation10], %s306
        %s308 = sand.u32 %s147, 1
        %s309 = smul.addr %s308, 64
        %s310 = scalar_lea.vmem [#allocation9], %s309
        %p311 = pneg %p188
        %p312 = pneg %p185
        %s313 = sand.u32 %s27, 1
        %s314 = scalar_lea.sflag [#allocation10], %s313
        %s315 = sand.u32 %s175, 1
        %s316 = smul.addr %s315, 64
        %s317 = scalar_lea.vmem [#allocation11], %s316
        %s318 = smul.u32 16, %s32
        %s319 = smul.u32 16, %s32
        %s320 = smul.u32 16, %s32
        %s321 = smul.u32 16, %s32
        %v322 = vld [vmem:[%s270] sm:$0xf]
        %v323 = vld [vmem:[%s270 + $0x4] sm:$0xf]
        %v324 = vld [vmem:[%s270 + $0x8] sm:$0xf]
        %v325 = vld [vmem:[%s270 + $0xc] sm:$0xf]
        %v326 = vld [vmem:[%s270 + $0x10] sm:$0xf]
        %v327 = vld [vmem:[%s270 + $0x14] sm:$0xf]
        %v328 = vld [vmem:[%s270 + $0x18] sm:$0xf]
        %v329 = vld [vmem:[%s270 + $0x1c] sm:$0xf]
        %v330 = vld [vmem:[%s270 + $0x20] sm:$0xf]
        %v331 = vld [vmem:[%s270 + $0x24] sm:$0xf]
        %v332 = vld [vmem:[%s270 + $0x28] sm:$0xf]
        %v333 = vld [vmem:[%s270 + $0x2c] sm:$0xf]
        %v334 = vld [vmem:[%s270 + $0x30] sm:$0xf]
        %v335 = vld [vmem:[%s270 + $0x34] sm:$0xf]
        %v336 = vld [vmem:[%s270 + $0x38] sm:$0xf]
        %v337 = vld [vmem:[%s270 + $0x3c] sm:$0xf]
        %v338 = vld [vmem:[#allocation5] sm:$0xf]
        %v339 = vld [vmem:[#allocation5 + $0x4] sm:$0xf]
        %v340 = vld [vmem:[#allocation5 + $0x8] sm:$0xf]
        %v341 = vld [vmem:[#allocation5 + $0xc] sm:$0xf]
        %v342 = vld [vmem:[#allocation5 + $0x10] sm:$0xf]
        %v343 = vld [vmem:[#allocation5 + $0x14] sm:$0xf]
        %v344 = vld [vmem:[#allocation5 + $0x18] sm:$0xf]
        %v345 = vld [vmem:[#allocation5 + $0x1c] sm:$0xf]
        %v346 = vld [vmem:[#allocation5 + $0x20] sm:$0xf]
        %v347 = vld [vmem:[#allocation5 + $0x24] sm:$0xf]
        %v348 = vld [vmem:[#allocation5 + $0x28] sm:$0xf]
        %v349 = vld [vmem:[#allocation5 + $0x2c] sm:$0xf]
        %v350 = vld [vmem:[#allocation5 + $0x30] sm:$0xf]
        %v351 = vld [vmem:[#allocation5 + $0x34] sm:$0xf]
        %v352 = vld [vmem:[#allocation5 + $0x38] sm:$0xf]
        %v353 = vld [vmem:[#allocation5 + $0x3c] sm:$0xf]
        %v370 = vunpack.c.l.b16 %v322
        %v371 = vunpack.c.l.b16 %v323
        %v372 = vunpack.c.l.b16 %v324
        %v373 = vunpack.c.l.b16 %v325
        %v374 = vunpack.c.l.b16 %v326
        %v375 = vunpack.c.l.b16 %v327
        %v376 = vunpack.c.l.b16 %v328
        %v377 = vunpack.c.l.b16 %v329
        %v378 = vunpack.c.l.b16 %v330
        %v379 = vunpack.c.l.b16 %v331
        %v380 = vunpack.c.l.b16 %v332
        %v381 = vunpack.c.l.b16 %v333
        %v382 = vunpack.c.l.b16 %v334
        %v383 = vunpack.c.l.b16 %v335
        %v384 = vunpack.c.l.b16 %v336
        %v385 = vunpack.c.l.b16 %v337
        %v386 = vpack.c.b16 %v371, %v370
        %v387 = vpack.c.b16 %v373, %v372
        %v388 = vpack.c.b16 %v375, %v374
        %v389 = vpack.c.b16 %v377, %v376
        %v390 = vpack.c.b16 %v379, %v378
        %v391 = vpack.c.b16 %v381, %v380
        %v392 = vpack.c.b16 %v383, %v382
        %v393 = vpack.c.b16 %v385, %v384
        %v418 = vunpack.c.l.b16 %v338
        %v419 = vunpack.c.l.b16 %v339
        %v420 = vunpack.c.l.b16 %v340
        %v421 = vunpack.c.l.b16 %v341
        %v422 = vunpack.c.l.b16 %v342
        %v423 = vunpack.c.l.b16 %v343
        %v424 = vunpack.c.l.b16 %v344
        %v425 = vunpack.c.l.b16 %v345
        %v426 = vunpack.c.l.b16 %v346
        %v427 = vunpack.c.l.b16 %v347
        %v428 = vunpack.c.l.b16 %v348
        %v429 = vunpack.c.l.b16 %v349
        %v430 = vunpack.c.l.b16 %v350
        %v431 = vunpack.c.l.b16 %v351
        %v432 = vunpack.c.l.b16 %v352
        %v433 = vunpack.c.l.b16 %v353
        %v434 = vpack.c.b16 %v419, %v418
        %v435 = vpack.c.b16 %v421, %v420
        %v436 = vpack.c.b16 %v423, %v422
        %v437 = vpack.c.b16 %v425, %v424
        %v438 = vpack.c.b16 %v427, %v426
        %v439 = vpack.c.b16 %v429, %v428
        %v440 = vpack.c.b16 %v431, %v430
        %v441 = vpack.c.b16 %v433, %v432
        %450 = vmatpush.bf16.msra.mxu0 %v441
        %451 = vmatpush.bf16.msra.mxu0 %v440
        %452 = vmatpush.bf16.msra.mxu0 %v439
        %453 = vmatpush.bf16.msra.mxu0 %v438
        %454 = vmatpush.bf16.msra.mxu0 %v437
        %455 = vmatpush.bf16.msra.mxu0 %v436
        %456 = vmatpush.bf16.msra.mxu0 %v435
        %457 = vmatpush.bf16.msra.mxu0 %v434
        %458 = vmatmul.bf16.gmra.mxu0 %v386
        %v459 = vpop.f32.mrf.mxu0
        %v460 = vadd.f32 0.0, %v459
        %v461 = vpop.f32.mrf.mxu0
        %v462 = vadd.f32 0.0, %v461
        %463 = vmatmul.bf16.gmra.mxu0 %v387
        %v464 = vpop.f32.mrf.mxu0
        %v465 = vadd.f32 0.0, %v464
        %v466 = vpop.f32.mrf.mxu0
        %v467 = vadd.f32 0.0, %v466
        %468 = vmatmul.bf16.gmra.mxu0 %v388
        %v469 = vpop.f32.mrf.mxu0
        %v470 = vadd.f32 0.0, %v469
        %v471 = vpop.f32.mrf.mxu0
        %v472 = vadd.f32 0.0, %v471
        %473 = vmatmul.bf16.gmra.mxu0 %v389
        %v474 = vpop.f32.mrf.mxu0
        %v475 = vadd.f32 0.0, %v474
        %v476 = vpop.f32.mrf.mxu0
        %v477 = vadd.f32 0.0, %v476
        %478 = vmatmul.bf16.gmra.mxu0 %v390
        %v479 = vpop.f32.mrf.mxu0
        %v480 = vadd.f32 0.0, %v479
        %v481 = vpop.f32.mrf.mxu0
        %v482 = vadd.f32 0.0, %v481
        %483 = vmatmul.bf16.gmra.mxu0 %v391
        %v484 = vpop.f32.mrf.mxu0
        %v485 = vadd.f32 0.0, %v484
        %v486 = vpop.f32.mrf.mxu0
        %v487 = vadd.f32 0.0, %v486
        %488 = vmatmul.bf16.gmra.mxu0 %v392
        %v489 = vpop.f32.mrf.mxu0
        %v490 = vadd.f32 0.0, %v489
        %v491 = vpop.f32.mrf.mxu0
        %v492 = vadd.f32 0.0, %v491
        %493 = vmatmul.bf16.gmra.mxu0 %v393
        %v494 = vpop.f32.mrf.mxu0
        %v495 = vadd.f32 0.0, %v494
        %v496 = vpop.f32.mrf.mxu0
        %v497 = vadd.f32 0.0, %v496
        %498 = vdwg.mxu0
        %v499 = vld [vmem:[#allocation7] sm:$0xff]
        %v500 = vld [vmem:[#allocation7 + $0x8] sm:$0xff]
        %v501 = vld [vmem:[#allocation7 + $0x10] sm:$0xff]
        %v502 = vld [vmem:[#allocation7 + $0x18] sm:$0xff]
        %v503 = vld [vmem:[#allocation7 + $0x20] sm:$0xff]
        %v504 = vld [vmem:[#allocation7 + $0x28] sm:$0xff]
        %v505 = vld [vmem:[#allocation7 + $0x30] sm:$0xff]
        %v506 = vld [vmem:[#allocation7 + $0x38] sm:$0xff]
        %v507 = vld [vmem:[#allocation7 + $0x40] sm:$0xff]
        %v508 = vld [vmem:[#allocation7 + $0x48] sm:$0xff]
        %v509 = vld [vmem:[#allocation7 + $0x50] sm:$0xff]
        %v510 = vld [vmem:[#allocation7 + $0x58] sm:$0xff]
        %v511 = vld [vmem:[#allocation7 + $0x60] sm:$0xff]
        %v512 = vld [vmem:[#allocation7 + $0x68] sm:$0xff]
        %v513 = vld [vmem:[#allocation7 + $0x70] sm:$0xff]
        %v514 = vld [vmem:[#allocation7 + $0x78] sm:$0xff]
        %v531 = vunpack.c.l.b16 %v499
        %v532 = vunpack.c.h.b16 %v499
        %v533 = vunpack.c.l.b16 %v500
        %v534 = vunpack.c.h.b16 %v500
        %v535 = vunpack.c.l.b16 %v501
        %v536 = vunpack.c.h.b16 %v501
        %v537 = vunpack.c.l.b16 %v502
        %v538 = vunpack.c.h.b16 %v502
        %v539 = vunpack.c.l.b16 %v503
        %v540 = vunpack.c.h.b16 %v503
        %v541 = vunpack.c.l.b16 %v504
        %v542 = vunpack.c.h.b16 %v504
        %v543 = vunpack.c.l.b16 %v505
        %v544 = vunpack.c.h.b16 %v505
        %v545 = vunpack.c.l.b16 %v506
        %v546 = vunpack.c.h.b16 %v506
        %v547 = vunpack.c.l.b16 %v507
        %v548 = vunpack.c.h.b16 %v507
        %v549 = vunpack.c.l.b16 %v508
        %v550 = vunpack.c.h.b16 %v508
        %v551 = vunpack.c.l.b16 %v509
        %v552 = vunpack.c.h.b16 %v509
        %v553 = vunpack.c.l.b16 %v510
        %v554 = vunpack.c.h.b16 %v510
        %v555 = vunpack.c.l.b16 %v511
        %v556 = vunpack.c.h.b16 %v511
        %v557 = vunpack.c.l.b16 %v512
        %v558 = vunpack.c.h.b16 %v512
        %v559 = vunpack.c.l.b16 %v513
        %v560 = vunpack.c.h.b16 %v513
        %v561 = vunpack.c.l.b16 %v514
        %v562 = vunpack.c.h.b16 %v514
        %v563 = vpack.c.b16 %v533, %v531
        %v564 = vpack.c.b16 %v534, %v532
        %v565 = vpack.c.b16 %v537, %v535
        %v566 = vpack.c.b16 %v538, %v536
        %v567 = vpack.c.b16 %v541, %v539
        %v568 = vpack.c.b16 %v542, %v540
        %v569 = vpack.c.b16 %v545, %v543
        %v570 = vpack.c.b16 %v546, %v544
        %v571 = vpack.c.b16 %v549, %v547
        %v572 = vpack.c.b16 %v550, %v548
        %v573 = vpack.c.b16 %v553, %v551
        %v574 = vpack.c.b16 %v554, %v552
        %v575 = vpack.c.b16 %v557, %v555
        %v576 = vpack.c.b16 %v558, %v556
        %v577 = vpack.c.b16 %v561, %v559
        %v578 = vpack.c.b16 %v562, %v560
        %595 = vmatpush.bf16.msra.mxu0 %v577
        %596 = vmatpush.bf16.msra.mxu0 %v575
        %597 = vmatpush.bf16.msra.mxu0 %v573
        %598 = vmatpush.bf16.msra.mxu0 %v571
        %599 = vmatpush.bf16.msra.mxu0 %v569
        %600 = vmatpush.bf16.msra.mxu0 %v567
        %601 = vmatpush.bf16.msra.mxu0 %v565
        %602 = vmatpush.bf16.msra.mxu0 %v563
        %603 = vmatmul.bf16.gmra.mxu0 %v386
        %v604 = vpop.f32.mrf.mxu0
        %v605 = vadd.f32 0.0, %v604
        %v606 = vpop.f32.mrf.mxu0
        %v607 = vadd.f32 0.0, %v606
        %608 = vmatmul.bf16.gmra.mxu0 %v387
        %v609 = vpop.f32.mrf.mxu0
        %v610 = vadd.f32 0.0, %v609
        %v611 = vpop.f32.mrf.mxu0
        %v612 = vadd.f32 0.0, %v611
        %613 = vmatmul.bf16.gmra.mxu0 %v388
        %v614 = vpop.f32.mrf.mxu0
        %v615 = vadd.f32 0.0, %v614
        %v616 = vpop.f32.mrf.mxu0
        %v617 = vadd.f32 0.0, %v616
        %618 = vmatmul.bf16.gmra.mxu0 %v389
        %v619 = vpop.f32.mrf.mxu0
        %v620 = vadd.f32 0.0, %v619
        %v621 = vpop.f32.mrf.mxu0
        %v622 = vadd.f32 0.0, %v621
        %623 = vmatmul.bf16.gmra.mxu0 %v390
        %v624 = vpop.f32.mrf.mxu0
        %v625 = vadd.f32 0.0, %v624
        %v626 = vpop.f32.mrf.mxu0
        %v627 = vadd.f32 0.0, %v626
        %628 = vmatmul.bf16.gmra.mxu0 %v391
        %v629 = vpop.f32.mrf.mxu0
        %v630 = vadd.f32 0.0, %v629
        %v631 = vpop.f32.mrf.mxu0
        %v632 = vadd.f32 0.0, %v631
        %633 = vmatmul.bf16.gmra.mxu0 %v392
        %v634 = vpop.f32.mrf.mxu0
        %v635 = vadd.f32 0.0, %v634
        %v636 = vpop.f32.mrf.mxu0
        %v637 = vadd.f32 0.0, %v636
        %638 = vmatmul.bf16.gmra.mxu0 %v393
        %v639 = vpop.f32.mrf.mxu0
        %v640 = vadd.f32 0.0, %v639
        %v641 = vpop.f32.mrf.mxu0
        %v642 = vadd.f32 0.0, %v641
        %643 = vdwg.mxu0
        %644 = vmatpush.bf16.msra.mxu0 %v578
        %645 = vmatpush.bf16.msra.mxu0 %v576
        %646 = vmatpush.bf16.msra.mxu0 %v574
        %647 = vmatpush.bf16.msra.mxu0 %v572
        %648 = vmatpush.bf16.msra.mxu0 %v570
        %649 = vmatpush.bf16.msra.mxu0 %v568
        %650 = vmatpush.bf16.msra.mxu0 %v566
        %651 = vmatpush.bf16.msra.mxu0 %v564
        %652 = vmatmul.bf16.gmra.mxu0 %v386
        %v653 = vpop.f32.mrf.mxu0
        %v654 = vadd.f32 0.0, %v653
        %v655 = vpop.f32.mrf.mxu0
        %v656 = vadd.f32 0.0, %v655
        %657 = vmatmul.bf16.gmra.mxu0 %v387
        %v658 = vpop.f32.mrf.mxu0
        %v659 = vadd.f32 0.0, %v658
        %v660 = vpop.f32.mrf.mxu0
        %v661 = vadd.f32 0.0, %v660
        %662 = vmatmul.bf16.gmra.mxu0 %v388
        %v663 = vpop.f32.mrf.mxu0
        %v664 = vadd.f32 0.0, %v663
        %v665 = vpop.f32.mrf.mxu0
        %v666 = vadd.f32 0.0, %v665
        %667 = vmatmul.bf16.gmra.mxu0 %v389
        %v668 = vpop.f32.mrf.mxu0
        %v669 = vadd.f32 0.0, %v668
        %v670 = vpop.f32.mrf.mxu0
        %v671 = vadd.f32 0.0, %v670
        %672 = vmatmul.bf16.gmra.mxu0 %v390
        %v673 = vpop.f32.mrf.mxu0
        %v674 = vadd.f32 0.0, %v673
        %v675 = vpop.f32.mrf.mxu0
        %v676 = vadd.f32 0.0, %v675
        %677 = vmatmul.bf16.gmra.mxu0 %v391
        %v678 = vpop.f32.mrf.mxu0
        %v679 = vadd.f32 0.0, %v678
        %v680 = vpop.f32.mrf.mxu0
        %v681 = vadd.f32 0.0, %v680
        %682 = vmatmul.bf16.gmra.mxu0 %v392
        %v683 = vpop.f32.mrf.mxu0
        %v684 = vadd.f32 0.0, %v683
        %v685 = vpop.f32.mrf.mxu0
        %v686 = vadd.f32 0.0, %v685
        %687 = vmatmul.bf16.gmra.mxu0 %v393
        %v688 = vpop.f32.mrf.mxu0
        %v689 = vadd.f32 0.0, %v688
        %v690 = vpop.f32.mrf.mxu0
        %v691 = vadd.f32 0.0, %v690
        %692 = vdwg.mxu0
        %v693 = vpack.c.bf16 %v460, %v460
        %v694 = vpack.c.bf16 %v462, %v462
        %v695 = vpack.c.bf16 %v465, %v465
        %v696 = vpack.c.bf16 %v467, %v467
        %v697 = vpack.c.bf16 %v470, %v470
        %v698 = vpack.c.bf16 %v472, %v472
        %v699 = vpack.c.bf16 %v475, %v475
        %v700 = vpack.c.bf16 %v477, %v477
        %v701 = vpack.c.bf16 %v480, %v480
        %v702 = vpack.c.bf16 %v482, %v482
        %v703 = vpack.c.bf16 %v485, %v485
        %v704 = vpack.c.bf16 %v487, %v487
        %v705 = vpack.c.bf16 %v490, %v490
        %v706 = vpack.c.bf16 %v492, %v492
        %v707 = vpack.c.bf16 %v495, %v495
        %v708 = vpack.c.bf16 %v497, %v497
        %709 = vst [vmem:[%s303] sm:$0xf] %v693
        %710 = vst [vmem:[%s303 + $0x4] sm:$0xf] %v694
        %711 = vst [vmem:[%s303 + $0x8] sm:$0xf] %v695
        %712 = vst [vmem:[%s303 + $0xc] sm:$0xf] %v696
        %713 = vst [vmem:[%s303 + $0x10] sm:$0xf] %v697
        %714 = vst [vmem:[%s303 + $0x14] sm:$0xf] %v698
        %715 = vst [vmem:[%s303 + $0x18] sm:$0xf] %v699
        %716 = vst [vmem:[%s303 + $0x1c] sm:$0xf] %v700
        %717 = vst [vmem:[%s303 + $0x20] sm:$0xf] %v701
        %718 = vst [vmem:[%s303 + $0x24] sm:$0xf] %v702
        %719 = vst [vmem:[%s303 + $0x28] sm:$0xf] %v703
        %720 = vst [vmem:[%s303 + $0x2c] sm:$0xf] %v704
        %721 = vst [vmem:[%s303 + $0x30] sm:$0xf] %v705
        %722 = vst [vmem:[%s303 + $0x34] sm:$0xf] %v706
        %723 = vst [vmem:[%s303 + $0x38] sm:$0xf] %v707
        %724 = vst [vmem:[%s303 + $0x3c] sm:$0xf] %v708
        %v725 = vpack.c.bf16 %v605, %v605
        %v726 = vpack.c.bf16 %v607, %v607
        %v727 = vpack.c.bf16 %v610, %v610
        %v728 = vpack.c.bf16 %v612, %v612
        %v729 = vpack.c.bf16 %v615, %v615
        %v730 = vpack.c.bf16 %v617, %v617
        %v731 = vpack.c.bf16 %v620, %v620
        %v732 = vpack.c.bf16 %v622, %v622
        %v733 = vpack.c.bf16 %v625, %v625
        %v734 = vpack.c.bf16 %v627, %v627
        %v735 = vpack.c.bf16 %v630, %v630
        %v736 = vpack.c.bf16 %v632, %v632
        %v737 = vpack.c.bf16 %v635, %v635
        %v738 = vpack.c.bf16 %v637, %v637
        %v739 = vpack.c.bf16 %v640, %v640
        %v740 = vpack.c.bf16 %v642, %v642
        %741 = vst [vmem:[%s310] sm:$0xf] %v725
        %742 = vst [vmem:[%s310 + $0x4] sm:$0xf] %v726
        %743 = vst [vmem:[%s310 + $0x8] sm:$0xf] %v727
        %744 = vst [vmem:[%s310 + $0xc] sm:$0xf] %v728
        %745 = vst [vmem:[%s310 + $0x10] sm:$0xf] %v729
        %746 = vst [vmem:[%s310 + $0x14] sm:$0xf] %v730
        %747 = vst [vmem:[%s310 + $0x18] sm:$0xf] %v731
        %748 = vst [vmem:[%s310 + $0x1c] sm:$0xf] %v732
        %749 = vst [vmem:[%s310 + $0x20] sm:$0xf] %v733
        %750 = vst [vmem:[%s310 + $0x24] sm:$0xf] %v734
        %751 = vst [vmem:[%s310 + $0x28] sm:$0xf] %v735
        %752 = vst [vmem:[%s310 + $0x2c] sm:$0xf] %v736
        %753 = vst [vmem:[%s310 + $0x30] sm:$0xf] %v737
        %754 = vst [vmem:[%s310 + $0x34] sm:$0xf] %v738
        %755 = vst [vmem:[%s310 + $0x38] sm:$0xf] %v739
        %756 = vst [vmem:[%s310 + $0x3c] sm:$0xf] %v740
        %v757 = vpack.c.bf16 %v654, %v654
        %v758 = vpack.c.bf16 %v656, %v656
        %v759 = vpack.c.bf16 %v659, %v659
        %v760 = vpack.c.bf16 %v661, %v661
        %v761 = vpack.c.bf16 %v664, %v664
        %v762 = vpack.c.bf16 %v666, %v666
        %v763 = vpack.c.bf16 %v669, %v669
        %v764 = vpack.c.bf16 %v671, %v671
        %v765 = vpack.c.bf16 %v674, %v674
        %v766 = vpack.c.bf16 %v676, %v676
        %v767 = vpack.c.bf16 %v679, %v679
        %v768 = vpack.c.bf16 %v681, %v681
        %v769 = vpack.c.bf16 %v684, %v684
        %v770 = vpack.c.bf16 %v686, %v686
        %v771 = vpack.c.bf16 %v689, %v689
        %v772 = vpack.c.bf16 %v691, %v691
        %773 = vst [vmem:[%s317] sm:$0xf] %v757
        %774 = vst [vmem:[%s317 + $0x4] sm:$0xf] %v758
        %775 = vst [vmem:[%s317 + $0x8] sm:$0xf] %v759
        %776 = vst [vmem:[%s317 + $0xc] sm:$0xf] %v760
        %777 = vst [vmem:[%s317 + $0x10] sm:$0xf] %v761
        %778 = vst [vmem:[%s317 + $0x14] sm:$0xf] %v762
        %779 = vst [vmem:[%s317 + $0x18] sm:$0xf] %v763
        %780 = vst [vmem:[%s317 + $0x1c] sm:$0xf] %v764
        %781 = vst [vmem:[%s317 + $0x20] sm:$0xf] %v765
        %782 = vst [vmem:[%s317 + $0x24] sm:$0xf] %v766
        %783 = vst [vmem:[%s317 + $0x28] sm:$0xf] %v767
        %784 = vst [vmem:[%s317 + $0x2c] sm:$0xf] %v768
        %785 = vst [vmem:[%s317 + $0x30] sm:$0xf] %v769
        %786 = vst [vmem:[%s317 + $0x34] sm:$0xf] %v770
        %787 = vst [vmem:[%s317 + $0x38] sm:$0xf] %v771
        %788 = vst [vmem:[%s317 + $0x3c] sm:$0xf] %v772
        %s789 = sand.u32 %s119, 1
        %s790 = scalar_lea.sflag [#allocation4], %s789
        %s791 = sand.u32 %s119, 1
        %s792 = smul.addr %s791, 64
        %s793 = scalar_lea.vmem [#allocation8], %s792
        %s794 = sand.u32 %s27, 1
        %s795 = scalar_lea.sflag [#allocation10], %s794
        %s796 = sand.u32 %s147, 1
        %s797 = smul.addr %s796, 64
        %s798 = scalar_lea.vmem [#allocation9], %s797
        %s799 = sand.u32 %s27, 1
        %s800 = scalar_lea.sflag [#allocation10], %s799
        %s801 = sand.u32 %s175, 1
        %s802 = smul.addr %s801, 64
        %s803 = scalar_lea.vmem [#allocation11], %s802
        // Predicated region
        $region45: #{tpu_custom_call.1} parent=31 // pred_check
          %p804 = pneg %p129
        $region46: #{tpu_custom_call.1} parent=31 // pred_check_branch
          %806 = sbr.rel (%p804) target = $region48
        $region47: #{tpu_custom_call.1} parent=31 // pred_region
          %s807 = smul.u32 16, %s32
          %809 = vsyncadd %s790, 0
          %s810 = smul.addr %s31, 16
          %s811 = sadd.s32 %s807, %s810
          %s812 = smul.addr %s811, 4
          %s813 = scalar_lea.hbm %s3, %s812
          %s814 = sshll.u32 %s793, 4
          %s815 = int_to_ptr.vmem [resolvable:$true] %s814
          %s816 = sshll.u32 %s813, 4
          %s817 = int_to_ptr.hbm [resolvable:$true] %s816
          %822 = dma.vmem_to_hbm [thread:$0]  %s815, 1024, %s817, %s790, 64, 64, 4
        $region48: #{tpu_custom_call.1} parent=31 // pred_fallthru
          _
        // Predicated region
        $region49: #{tpu_custom_call.1} parent=31 // pred_check
          %p823 = pneg %p157
        $region50: #{tpu_custom_call.1} parent=31 // pred_check_branch
          %825 = sbr.rel (%p823) target = $region52
        $region51: #{tpu_custom_call.1} parent=31 // pred_region
          %s826 = smul.u32 16, %s32
          %828 = vsyncadd %s795, 0
          %s829 = smul.addr %s31, 16
          %s830 = sadd.s32 %s826, %s829
          %s831 = smul.addr %s830, 4
          %s832 = scalar_lea.hbm %s4, %s831
          %s833 = sshll.u32 %s798, 4
          %s834 = int_to_ptr.vmem [resolvable:$true] %s833
          %s835 = sshll.u32 %s832, 4
          %s836 = int_to_ptr.hbm [resolvable:$true] %s835
          %841 = dma.vmem_to_hbm [thread:$0]  %s834, 1024, %s836, %s795, 64, 64, 4
        $region52: #{tpu_custom_call.1} parent=31 // pred_fallthru
          _
        // Predicated region
        $region53: #{tpu_custom_call.1} parent=31 // pred_check
          %p842 = pneg %p185
        $region54: #{tpu_custom_call.1} parent=31 // pred_check_branch
          %844 = sbr.rel (%p842) target = $region56
        $region55: #{tpu_custom_call.1} parent=31 // pred_region
          %s845 = smul.u32 16, %s32
          %847 = vsyncadd %s800, 0
          %s848 = smul.addr %s31, 16
          %s849 = sadd.s32 %s845, %s848
          %s850 = smul.addr %s849, 4
          %s851 = scalar_lea.hbm %s5, %s850
          %s852 = sshll.u32 %s803, 4
          %s853 = int_to_ptr.vmem [resolvable:$true] %s852
          %s854 = sshll.u32 %s851, 4
          %s855 = int_to_ptr.hbm [resolvable:$true] %s854
          %860 = dma.vmem_to_hbm [thread:$0]  %s853, 1024, %s855, %s800, 64, 64, 4
        $region56: #{tpu_custom_call.1} parent=31 // pred_fallthru
          _
      $region32: #{tpu_custom_call.1} parent=5 // pred_fallthru
        _
      %p861 = scmp.le.s32.totalorder 2, %s22
      // Predicated region
      $region57: #{tpu_custom_call.1} parent=5 // pred_check
        %p862 = pneg %p861
      $region58: #{tpu_custom_call.1} parent=5 // pred_check_branch
        %864 = sbr.rel (%p862) target = $region60
      $region59: #{tpu_custom_call.1} parent=5 // pred_region
        %s865 = ssub.s32 %s22, 2
        // Predicated region
        $region61: #{tpu_custom_call.1} parent=59 // pred_check
          %p866 = pneg %p135
        $region62: #{tpu_custom_call.1} parent=59 // pred_check_branch
          %868 = sbr.rel (%p866) target = $region64
        $region63: #{tpu_custom_call.1} parent=59 // pred_region
          %s869 = sand.u32 %s120, 1
          %s870 = scalar_lea.sflag [#allocation4], %s869
          %s871 = sand.u32 %s120, 1
          %s872 = smul.addr %s871, 64
          %s873 = scalar_lea.vmem [#allocation8], %s872
          %875 = dma.done %s870, 1024
        $region64: #{tpu_custom_call.1} parent=59 // pred_fallthru
          _
        // Predicated region
        $region65: #{tpu_custom_call.1} parent=59 // pred_check
          %p876 = pneg %p163
        $region66: #{tpu_custom_call.1} parent=59 // pred_check_branch
          %878 = sbr.rel (%p876) target = $region68
        $region67: #{tpu_custom_call.1} parent=59 // pred_region
          %s879 = sand.u32 %s28, 1
          %s880 = scalar_lea.sflag [#allocation10], %s879
          %s881 = sand.u32 %s148, 1
          %s882 = smul.addr %s881, 64
          %s883 = scalar_lea.vmem [#allocation9], %s882
          %885 = dma.done %s880, 1024
        $region68: #{tpu_custom_call.1} parent=59 // pred_fallthru
          _
        // Predicated region
        $region69: #{tpu_custom_call.1} parent=59 // pred_check
          %p886 = pneg %p191
        $region70: #{tpu_custom_call.1} parent=59 // pred_check_branch
          %888 = sbr.rel (%p886) target = $region72
        $region71: #{tpu_custom_call.1} parent=59 // pred_region
          %s889 = sand.u32 %s28, 1
          %s890 = scalar_lea.sflag [#allocation10], %s889
          %s891 = sand.u32 %s176, 1
          %s892 = smul.addr %s891, 64
          %s893 = scalar_lea.vmem [#allocation11], %s892
          %895 = dma.done %s890, 1024
        $region72: #{tpu_custom_call.1} parent=59 // pred_fallthru
          _
      $region60: #{tpu_custom_call.1} parent=5 // pred_fallthru
        _
    $region6: #{tpu_custom_call.1} parent=1 // loop_footer
      %s26 = sadd.s32 1, %s22
    $region7: #{tpu_custom_call.1} parent=1 // loop_footer_branch
      %21 = sbr.rel target = $region3
    $region8: #{tpu_custom_call.1} parent=1 // loop_exit
      _
    %896 = vsyncpa [#allocation3], 1
    %s897 = scalar_lea.sflag [#allocation3], 1
    %898 = vsyncpa %s897, 1
    %899 = vsyncpa [#allocation6], 1
    %900 = vsyncpa [#allocation4], 1
    %s901 = scalar_lea.sflag [#allocation4], 1
    %902 = vsyncpa %s901, 1
    %903 = vsyncpa [#allocation10], 1
    %s904 = scalar_lea.sflag [#allocation10], 1
    %905 = vsyncpa %s904, 1

</llo_original>
